<compile_context>
chip_gen: v7x
topology: tpu7x:2x2x1
jax: 0.10.0
libtpu: 0.0.40
codegen_flags: <defaults>
</compile_context>

<pallas_src>
import functools

import jax
import jax.numpy as jnp
from jax.experimental import pallas as pl
from jax.experimental.pallas import tpu as pltpu

GAUSSIAN_STEPS = {1: 1.596, 2: 0.996, 3: 0.586, 4: 0.336,
                  5: 0.19, 6: 0.106, 7: 0.059, 8: 0.032}


def _round_up(x, m):
    return (x + m - 1) // m * m


def _mix_quant_linear_kernel(scale_ref, inv_step_ref, x_ref, wt_ref, b_ref,
                             o_ref, acc_ref, *, bits):
    """scale/inv_step: SMEM (len(bits),) f32; x:(tm,tk); wt:(tk,tn); b:(1,tn)."""
    k = pl.program_id(2)

    @pl.when(k == 0)
    def _():
        acc_ref[...] = jnp.zeros_like(acc_ref)

    # Dequantized mix of the (tk, tn) weight tile, kept in f32 so the quant
    # levels are exact.  Note: recomputed per batch tile; with tm >= 256 the
    # MXU work per weight element (2*tm flops) dominates the ~9*len(bits) VPU
    # ops, so the kernel stays MXU-bound.
    w = wt_ref[...]
    mix = jnp.zeros_like(w)
    for i, bit in enumerate(bits):                       # static unroll over bits
        lvls = 2.0 ** bit / 2.0
        q = jnp.clip(jnp.round(w * inv_step_ref[i]), -lvls, lvls - 1.0)
        mix = mix + q * scale_ref[i]                     # scale_i = step_i * sw_i

    # MXU: bf16 feed, f32 accumulation.
    acc_ref[...] += jax.lax.dot_general(
        x_ref[...].astype(jnp.bfloat16), mix.astype(jnp.bfloat16),
        dimension_numbers=(((1,), (0,)), ((), ())),
        preferred_element_type=jnp.float32)

    @pl.when(k == pl.num_programs(2) - 1)
    def _():
        o_ref[...] = acc_ref[...] + b_ref[...]           # bias broadcast over tm


def shared_mix_quant_linear(x, weight, bias, alpha_weight, bits, *,
                            weight_std=None):
    """x:(B,K); weight:(N,K) (nn.Linear layout); bias:(N,); alpha:(len(bits),)."""
    B, K = x.shape
    N = weight.shape[0]
    bits = tuple(bits)
    nb = len(bits)

    # Scalar glue (softmax over alpha, unbiased std) — tiny, stays in plain JAX.
    sw = jax.nn.softmax(alpha_weight.astype(jnp.float32))
    if weight_std is None:
        # TODO(synk): for inference with frozen weights, precompute weight_std
        # once and pass it in — otherwise this is an extra full HBM pass over
        # `weight` every call.
        weight_std = jnp.std(weight.astype(jnp.float32), ddof=1)
    gauss = jnp.asarray([GAUSSIAN_STEPS[b] for b in bits], jnp.float32)
    steps = gauss * weight_std
    inv_steps = 1.0 / steps
    scales = steps * sw                                   # folded step_i * sw_i

    # Tile sizes (sized against v7x's 64 MiB VMEM; also fine on v5e/v6e).
    tm = 256 if B > 256 else _round_up(max(B, 8), 8)
    tn = 256 if N > 256 else _round_up(max(N, 128), 128)
    tk = 512 if K > 512 else _round_up(max(K, 128), 128)
    Bp, Np, Kp = _round_up(B, tm), _round_up(N, tn), _round_up(K, tk)

    xp = jnp.pad(x.astype(jnp.float32), ((0, Bp - B), (0, Kp - K)))
    # Pre-transpose once: (N, K) -> (K, N); avoids a per-tile XLU transpose.
    wtp = jnp.pad(weight.astype(jnp.float32).T, ((0, Kp - K), (0, Np - N)))
    bp = jnp.pad(bias.astype(jnp.float32).reshape(1, N), ((0, 0), (0, Np - N)))

    grid = (Bp // tm, Np // tn, Kp // tk)

    cost = pl.CostEstimate(
        flops=2 * Bp * Np * Kp + 9 * nb * Kp * Np * grid[0],
        transcendentals=0,
        bytes_accessed=4 * (xp.size + wtp.size * grid[0] + bp.size + Bp * Np),
    )

    kernel = functools.partial(_mix_quant_linear_kernel, bits=bits)
    out = pl.pallas_call(
        kernel,
        out_shape=jax.ShapeDtypeStruct((Bp, Np), jnp.float32),
        grid=grid,
        in_specs=[
            pl.BlockSpec(memory_space=pltpu.MemorySpace.SMEM),   # scales (nb,)
            pl.BlockSpec(memory_space=pltpu.MemorySpace.SMEM),   # inv_steps (nb,)
            pl.BlockSpec((tm, tk), lambda i, j, k: (i, k)),      # x tile
            pl.BlockSpec((tk, tn), lambda i, j, k: (k, j)),      # w^T tile
            pl.BlockSpec((1, tn), lambda i, j, k: (0, j)),       # bias tile
        ],
        out_specs=pl.BlockSpec((tm, tn), lambda i, j, k: (i, j)),
        scratch_shapes=[pltpu.VMEM((tm, tn), jnp.float32)],
        compiler_params=pltpu.CompilerParams(
            dimension_semantics=("parallel", "parallel", "arbitrary"),
            vmem_limit_bytes=48 * 1024 * 1024),
        cost_estimate=cost,
    )(scales, inv_steps, xp, wtp, bp)
    return out[:B, :N]


def _reference(x, weight, bias, alpha_weight, bits):
    sw = jax.nn.softmax(alpha_weight)
    w_std = jnp.std(weight, ddof=1)
    mix = jnp.zeros_like(weight)
    for i, bit in enumerate(bits):
        step = GAUSSIAN_STEPS[bit] * w_std
        lvls = 2.0 ** bit / 2.0
        q = jnp.clip(jnp.round(weight / step), -lvls, lvls - 1.0) * step
        mix = mix + q * sw[i]
    return x @ mix.T + bias


if __name__ == "__main__":
    key = jax.random.PRNGKey(0)
    k_x, k_w, k_b = jax.random.split(key, 3)

    B, inplane, outplane = 8, 32, 16
    bits = (2, 4, 8)
    bound = 1.0 / float(inplane) ** 0.5

    x = jax.random.normal(k_x, (B, inplane), jnp.float32)
    # nn.Linear default init: U(-1/sqrt(inplane), 1/sqrt(inplane))
    weight = jax.random.uniform(k_w, (outplane, inplane), jnp.float32, -bound, bound)
    bias = jax.random.uniform(k_b, (outplane,), jnp.float32, -bound, bound)
    alpha_weight = jnp.full((len(bits),), 0.01, jnp.float32)   # matches .fill_(0.01)

    out = shared_mix_quant_linear(x, weight, bias, alpha_weight, bits)
    out = jax.block_until_ready(out)

    ref = _reference(x, weight, bias, alpha_weight, bits)
    assert out.shape == (B, outplane)
    # bf16 MXU feed (f32 accumulate, f32 dequant): tolerance loosened vs the
    # pure-f32 reference.
    assert jnp.allclose(out, ref, atol=2e-2, rtol=2e-2), "mismatch vs reference"
    print("KERNEL_OK")
</pallas_src>

<mosaic_0001>
module attributes {stable_mosaic.version = 11 : i64} {
  func.func @_mix_quant_linear_kernel(%arg0: i32, %arg1: i32, %arg2: i32, %arg3: memref<3xf32, #tpu.memory_space<smem>>, %arg4: memref<3xf32, #tpu.memory_space<smem>>, %arg5: memref<8x128xf32, #tpu.memory_space<vmem>>, %arg6: memref<128x128xf32, #tpu.memory_space<vmem>>, %arg7: memref<1x128xf32, #tpu.memory_space<vmem>>, %arg8: memref<8x128xf32, #tpu.memory_space<vmem>>, %arg9: memref<8x128xf32, #tpu.memory_space<vmem>>) attributes {dimension_semantics = [#tpu.dimension_semantics<parallel>, #tpu.dimension_semantics<parallel>, #tpu.dimension_semantics<arbitrary>], iteration_bounds = array<i64: 1, 1, 1>, scalar_prefetch = 0 : i64, scratch_operands = 1 : i64, tpu.core_type = #tpu.core_type<tc>, window_params = [{transform_indices = @transform_0, window_bounds = array<i64: 3>}, {transform_indices = @transform_1, window_bounds = array<i64: 3>}, {transform_indices = @transform_2, window_bounds = array<i64: 8, 128>}, {transform_indices = @transform_3, window_bounds = array<i64: 128, 128>}, {transform_indices = @transform_4, window_bounds = array<i64: 1, 128>}, {transform_indices = @transform_5, window_bounds = array<i64: 8, 128>}]} {
    %c0_i32 = arith.constant 0 : i32
    %0 = arith.cmpi eq, %arg2, %c0_i32 : i32
    %1 = arith.extui %0 : i1 to i32
    %c0_i32_0 = arith.constant 0 : i32
    %2 = arith.cmpi ne, %1, %c0_i32_0 : i32
    scf.if %2 {
      %cst_21 = arith.constant 0.000000e+00 : f32
      %51 = vector.broadcast %cst_21 : f32 to vector<8x128xf32>
      %c0_22 = arith.constant 0 : index
      %c0_23 = arith.constant 0 : index
      %52 = vector.load %arg9[%c0_22, %c0_23] : memref<8x128xf32, #tpu.memory_space<vmem>>, vector<8x128xf32>
      tpu.vector_store %arg9[%c0_22, %c0_23], %51 {strides = array<i32>} : memref<8x128xf32, #tpu.memory_space<vmem>>, vector<8x128xf32>,
    } else {
    }
    %c0 = arith.constant 0 : index
    %c0_1 = arith.constant 0 : index
    %3 = vector.load %arg6[%c0, %c0_1] : memref<128x128xf32, #tpu.memory_space<vmem>>, vector<128x128xf32>
    %cst = arith.constant 0.000000e+00 : f32
    %4 = vector.broadcast %cst : f32 to vector<128x128xf32>
    %c0_2 = arith.constant 0 : index
    %5 = memref.load %arg4[%c0_2] : memref<3xf32, #tpu.memory_space<smem>>
    %6 = vector.broadcast %5 : f32 to vector<128x128xf32>
    %7 = arith.mulf %3, %6 : vector<128x128xf32>
    %8 = math.roundeven %7 : vector<128x128xf32>
    %cst_3 = arith.constant -2.000000e+00 : f32
    %cst_4 = arith.constant 1.000000e+00 : f32
    %9 = vector.broadcast %cst_3 : f32 to vector<128x128xf32>
    %10 = arith.maximumf %9, %8 : vector<128x128xf32>
    %11 = vector.broadcast %cst_4 : f32 to vector<128x128xf32>
    %12 = arith.minimumf %11, %10 : vector<128x128xf32>
    %c0_5 = arith.constant 0 : index
    %13 = memref.load %arg3[%c0_5] : memref<3xf32, #tpu.memory_space<smem>>
    %14 = vector.broadcast %13 : f32 to vector<128x128xf32>
    %15 = arith.mulf %12, %14 : vector<128x128xf32>
    %16 = arith.addf %4, %15 : vector<128x128xf32>
    %c1 = arith.constant 1 : index
    %17 = memref.load %arg4[%c1] : memref<3xf32, #tpu.memory_space<smem>>
    %18 = vector.broadcast %17 : f32 to vector<128x128xf32>
    %19 = arith.mulf %3, %18 : vector<128x128xf32>
    %20 = math.roundeven %19 : vector<128x128xf32>
    %cst_6 = arith.constant -8.000000e+00 : f32
    %cst_7 = arith.constant 7.000000e+00 : f32
    %21 = vector.broadcast %cst_6 : f32 to vector<128x128xf32>
    %22 = arith.maximumf %21, %20 : vector<128x128xf32>
    %23 = vector.broadcast %cst_7 : f32 to vector<128x128xf32>
    %24 = arith.minimumf %23, %22 : vector<128x128xf32>
    %c1_8 = arith.constant 1 : index
    %25 = memref.load %arg3[%c1_8] : memref<3xf32, #tpu.memory_space<smem>>
    %26 = vector.broadcast %25 : f32 to vector<128x128xf32>
    %27 = arith.mulf %24, %26 : vector<128x128xf32>
    %28 = arith.addf %16, %27 : vector<128x128xf32>
    %c2 = arith.constant 2 : index
    %29 = memref.load %arg4[%c2] : memref<3xf32, #tpu.memory_space<smem>>
    %30 = vector.broadcast %29 : f32 to vector<128x128xf32>
    %31 = arith.mulf %3, %30 : vector<128x128xf32>
    %32 = math.roundeven %31 : vector<128x128xf32>
    %cst_9 = arith.constant -1.280000e+02 : f32
    %cst_10 = arith.constant 1.270000e+02 : f32
    %33 = vector.broadcast %cst_9 : f32 to vector<128x128xf32>
    %34 = arith.maximumf %33, %32 : vector<128x128xf32>
    %35 = vector.broadcast %cst_10 : f32 to vector<128x128xf32>
    %36 = arith.minimumf %35, %34 : vector<128x128xf32>
    %c2_11 = arith.constant 2 : index
    %37 = memref.load %arg3[%c2_11] : memref<3xf32, #tpu.memory_space<smem>>
    %38 = vector.broadcast %37 : f32 to vector<128x128xf32>
    %39 = arith.mulf %36, %38 : vector<128x128xf32>
    %40 = arith.addf %28, %39 : vector<128x128xf32>
    %c0_12 = arith.constant 0 : index
    %c0_13 = arith.constant 0 : index
    %41 = vector.load %arg9[%c0_12, %c0_13] : memref<8x128xf32, #tpu.memory_space<vmem>>, vector<8x128xf32>
    %c0_14 = arith.constant 0 : index
    %c0_15 = arith.constant 0 : index
    %42 = vector.load %arg5[%c0_14, %c0_15] : memref<8x128xf32, #tpu.memory_space<vmem>>, vector<8x128xf32>
    %43 = arith.truncf %42 : vector<8x128xf32> to vector<8x128xbf16>
    %44 = arith.truncf %40 : vector<128x128xf32> to vector<128x128xbf16>
    %cst_16 = arith.constant dense<0.000000e+00> : vector<8x128xf32>
    %45 = tpu.matmul %43, %44, %cst_16 {dimension_numbers = #tpu.dot_dimension_numbers<[1], [0], [0], [1], [0, 0, 1, 1], [], []>} : vector<8x128xbf16>, vector<128x128xbf16>, vector<8x128xf32> -> vector<8x128xf32>
    %46 = arith.addf %41, %45 : vector<8x128xf32>
    %c0_17 = arith.constant 0 : index
    %c0_18 = arith.constant 0 : index
    %47 = vector.load %arg9[%c0_17, %c0_18] : memref<8x128xf32, #tpu.memory_space<vmem>>, vector<8x128xf32>
    tpu.vector_store %arg9[%c0_17, %c0_18], %46 {strides = array<i32>} : memref<8x128xf32, #tpu.memory_space<vmem>>, vector<8x128xf32>,
    %c0_i32_19 = arith.constant 0 : i32
    %48 = arith.cmpi eq, %arg2, %c0_i32_19 : i32
    %49 = arith.extui %48 : i1 to i32
    %c0_i32_20 = arith.constant 0 : i32
    %50 = arith.cmpi ne, %49, %c0_i32_20 : i32
    scf.if %50 {
      %c0_21 = arith.constant 0 : index
      %c0_22 = arith.constant 0 : index
      %51 = vector.load %arg9[%c0_21, %c0_22] : memref<8x128xf32, #tpu.memory_space<vmem>>, vector<8x128xf32>
      %c0_23 = arith.constant 0 : index
      %c0_24 = arith.constant 0 : index
      %52 = vector.load %arg7[%c0_23, %c0_24] : memref<1x128xf32, #tpu.memory_space<vmem>>, vector<1x128xf32>
      %53 = vector.broadcast %52 : vector<1x128xf32> to vector<8x128xf32>
      %54 = arith.addf %51, %53 : vector<8x128xf32>
      %c0_25 = arith.constant 0 : index
      %c0_26 = arith.constant 0 : index
      %55 = vector.load %arg8[%c0_25, %c0_26] : memref<8x128xf32, #tpu.memory_space<vmem>>, vector<8x128xf32>
      tpu.vector_store %arg8[%c0_25, %c0_26], %54 {strides = array<i32>} : memref<8x128xf32, #tpu.memory_space<vmem>>, vector<8x128xf32>,
    } else {
    }
    return
  }
  func.func @transform_0(%arg0: i32, %arg1: i32, %arg2: i32) -> i32 {
    %c0_i32 = arith.constant 0 : i32
    %c0_i32_0 = arith.constant 0 : i32
    return %c0_i32 : i32
  }
  func.func @transform_1(%arg0: i32, %arg1: i32, %arg2: i32) -> i32 {
    %c0_i32 = arith.constant 0 : i32
    %c0_i32_0 = arith.constant 0 : i32
    return %c0_i32 : i32
  }
  func.func @transform_2(%arg0: i32, %arg1: i32, %arg2: i32) -> (i32, i32) {
    %c0_i32 = arith.constant 0 : i32
    return %arg0, %arg2 : i32, i32
  }
  func.func @transform_3(%arg0: i32, %arg1: i32, %arg2: i32) -> (i32, i32) {
    %c0_i32 = arith.constant 0 : i32
    return %arg2, %arg1 : i32, i32
  }
  func.func @transform_4(%arg0: i32, %arg1: i32, %arg2: i32) -> (i32, i32) {
    %c0_i32 = arith.constant 0 : i32
    %c0_i32_0 = arith.constant 0 : i32
    return %c0_i32, %arg1 : i32, i32
  }
  func.func @transform_5(%arg0: i32, %arg1: i32, %arg2: i32) -> (i32, i32) {
    %c0_i32 = arith.constant 0 : i32
    return %arg0, %arg1 : i32, i32
  }
}

</mosaic_0001>

<llo_original>
// kernel: tpu_custom_call.1
$region0: #{tpu_custom_call.1}
  #allocation0 [shape = 'u32[]', space=smem, size = 0x4, offset = 0x4, fixed_abs, tag = 'smem constant byte address 0x4 - core index']
  #allocation1 [shape = 'u32[144,128]{1,0:T(1,128)}', space=vmem, size = 0x12000, scoped, tag = 'internal scratch']
  #allocation2 [shape = 'f32[8,128]{1,0:T(8,128)}', space=vmem, size = 0x1000, scoped, tag = 'scratch operand']
  %s0 = inlined_call_operand.hbm [shape: f32[3], index: 0, kind: input, shape index: {}]
  %s1 = inlined_call_operand.vmem [shape: f32[3], index: 1, kind: input, shape index: {}]
  %s2 = inlined_call_operand.hbm [shape: f32[8,128], index: 2, kind: input, shape index: {}]
  %s3 = inlined_call_operand.hbm [shape: f32[128,128], index: 3, kind: input, shape index: {}]
  %s4 = inlined_call_operand.vmem [shape: f32[1,128], index: 4, kind: input, shape index: {}]
  %s5 = inlined_call_operand.hbm [shape: f32[8,128], index: 5, kind: output, shape index: {}]
  %s6 = sld [smem:[#allocation0]]
  $region54: #{tpu_custom_call.1} parent=0
    _
  %s8 = ssub.s32 1, %s6
  %s9 = scalar_select 0, %s8, %s6
  $region1: #{tpu_custom_call.1} parent=0
    #allocation3 [shape = 'u8[512]{0}', space=smem, size = 0x200, scoped, tag = 'input window, operand 0, single buffered']
    #allocation4 [shape = 's32[1]{0}', space=sflag, size = 0x4, scoped, tag = 'scoped memory for tpu_custom_call.1']
    #allocation5 [shape = 's32[1]{0}', space=sflag, size = 0x4, scoped, tag = 'scoped memory for tpu_custom_call.1']
    #allocation6 [shape = 's32[1]{0}', space=sflag, size = 0x4, scoped, tag = 'scoped memory for tpu_custom_call.1']
    #allocation7 [shape = 's32[1]{0}', space=sflag, size = 0x4, scoped, tag = 'scoped memory for tpu_custom_call.1']
    #allocation8 [shape = 'u8[512]{0}', space=smem, size = 0x200, scoped, tag = 'input window, operand 1, single buffered']
    #allocation9 [shape = 'u8[4096]{0}', space=vmem, size = 0x1000, scoped, tag = 'input window, operand 2, single buffered']
    #allocation10 [shape = 'u8[65536]{0}', space=vmem, size = 0x10000, scoped, tag = 'input window, operand 3, single buffered']
    #allocation11 [shape = 's32[1]{0}', space=sflag, size = 0x4, scoped, tag = 'scoped memory for tpu_custom_call.1']
    #allocation12 [shape = 'u8[4096]{0}', space=vmem, size = 0x1000, scoped, tag = 'output window, operand 0, single buffered']
    %10 = vsyncpa [#allocation6], 0
    %11 = vsyncpa [#allocation7], 0
    %12 = vsyncpa [#allocation4], 0
    %13 = vsyncpa [#allocation11], 0
    %14 = vsyncpa [#allocation5], 0
    // Predicated region
    $region2: #{tpu_custom_call.1} parent=1 // pred_check
      _
    $region3: #{tpu_custom_call.1} parent=1 // pred_check_branch
      %16 = sbr.rel (0) target = $region5
    $region4: #{tpu_custom_call.1} parent=1 // pred_region
      %s18 = ssub.s32 16, 16
      %19 = vsyncadd [#allocation6], %s18
      %22 = dma.hbm_to_smem %s0, 16, [#allocation3], [#allocation6]
    $region5: #{tpu_custom_call.1} parent=1 // pred_fallthru
      _
    // Predicated region
    $region6: #{tpu_custom_call.1} parent=1 // pred_check
      _
    $region7: #{tpu_custom_call.1} parent=1 // pred_check_branch
      %24 = sbr.rel (0) target = $region9
    $region8: #{tpu_custom_call.1} parent=1 // pred_region
      %s26 = ssub.s32 16, 16
      %27 = vsyncadd [#allocation7], %s26
      %s29 = sshll.u32 %s1, 4
      %s30 = int_to_ptr.vmem [resolvable:$true] %s29
      %32 = dma.vmem_to_smem %s30, 16, [#allocation8], [#allocation7]
    $region9: #{tpu_custom_call.1} parent=1 // pred_fallthru
      _
    // Predicated region
    $region10: #{tpu_custom_call.1} parent=1 // pred_check
      _
    $region11: #{tpu_custom_call.1} parent=1 // pred_check_branch
      %34 = sbr.rel (0) target = $region13
    $region12: #{tpu_custom_call.1} parent=1 // pred_region
      %s36 = ssub.s32 128, 128
      %37 = vsyncadd [#allocation4], %s36
      %s39 = sshll.u32 [#allocation9], 4
      %s40 = int_to_ptr.vmem [resolvable:$true] %s39
      %42 = dma.hbm_to_vmem [thread:$0]  %s2, 128, %s40, [#allocation4]
    $region13: #{tpu_custom_call.1} parent=1 // pred_fallthru
      _
    // Predicated region
    $region14: #{tpu_custom_call.1} parent=1 // pred_check
      _
    $region15: #{tpu_custom_call.1} parent=1 // pred_check_branch
      %44 = sbr.rel (0) target = $region17
    $region16: #{tpu_custom_call.1} parent=1 // pred_region
      %s46 = ssub.s32 2048, 2048
      %47 = vsyncadd [#allocation11], %s46
      %s48 = sshll.u32 [#allocation10], 4
      %s49 = int_to_ptr.vmem [resolvable:$true] %s48
      %54 = dma.hbm_to_vmem [thread:$0]  %s3, 2048, %s49, [#allocation11], 128, 128, 8
    $region17: #{tpu_custom_call.1} parent=1 // pred_fallthru
      _
    // Predicated region
    $region18: #{tpu_custom_call.1} parent=1 // pred_check
      _
    $region19: #{tpu_custom_call.1} parent=1 // pred_check_branch
      %56 = sbr.rel (0) target = $region21
    $region20: #{tpu_custom_call.1} parent=1 // pred_region
      _
    $region21: #{tpu_custom_call.1} parent=1 // pred_fallthru
      _
    // Predicated region
    $region22: #{tpu_custom_call.1} parent=1 // pred_check
      _
    $region23: #{tpu_custom_call.1} parent=1 // pred_check_branch
      %58 = sbr.rel (0) target = $region25
    $region24: #{tpu_custom_call.1} parent=1 // pred_region
      %59 = dma.done [#allocation6], 16
    $region25: #{tpu_custom_call.1} parent=1 // pred_fallthru
      _
    // Predicated region
    $region26: #{tpu_custom_call.1} parent=1 // pred_check
      _
    $region27: #{tpu_custom_call.1} parent=1 // pred_check_branch
      %61 = sbr.rel (0) target = $region29
    $region28: #{tpu_custom_call.1} parent=1 // pred_region
      %62 = dma.done [#allocation7], 16
    $region29: #{tpu_custom_call.1} parent=1 // pred_fallthru
      _
    // Predicated region
    $region30: #{tpu_custom_call.1} parent=1 // pred_check
      _
    $region31: #{tpu_custom_call.1} parent=1 // pred_check_branch
      %64 = sbr.rel (0) target = $region33
    $region32: #{tpu_custom_call.1} parent=1 // pred_region
      %65 = dma.done [#allocation4], 128
    $region33: #{tpu_custom_call.1} parent=1 // pred_fallthru
      _
    // Predicated region
    $region34: #{tpu_custom_call.1} parent=1 // pred_check
      _
    $region35: #{tpu_custom_call.1} parent=1 // pred_check_branch
      %67 = sbr.rel (0) target = $region37
    $region36: #{tpu_custom_call.1} parent=1 // pred_region
      %68 = dma.done [#allocation11], 2048
    $region37: #{tpu_custom_call.1} parent=1 // pred_fallthru
      _
    %69 = sfence
    %p71 = scmp.eq.s32.totalorder 0, 0
    // Predicated region
    $region38: #{tpu_custom_call.1} parent=1 // pred_check
      %p72 = pneg %p71
    $region39: #{tpu_custom_call.1} parent=1 // pred_check_branch
      %74 = sbr.rel (%p72) target = $region41
    $region40: #{tpu_custom_call.1} parent=1 // pred_region
      %75 = vst [vmem:[#allocation2] sm:$0xff] 0.0
    $region41: #{tpu_custom_call.1} parent=1 // pred_fallthru
      _
    %v76 = vld [vmem:[#allocation10] sm:$0xff]
    %v77 = vld [vmem:[#allocation10 + $0x8] sm:$0xff]
    %v78 = vld [vmem:[#allocation10 + $0x10] sm:$0xff]
    %v79 = vld [vmem:[#allocation10 + $0x18] sm:$0xff]
    %v80 = vld [vmem:[#allocation10 + $0x20] sm:$0xff]
    %v81 = vld [vmem:[#allocation10 + $0x28] sm:$0xff]
    %v82 = vld [vmem:[#allocation10 + $0x30] sm:$0xff]
    %v83 = vld [vmem:[#allocation10 + $0x38] sm:$0xff]
    %v84 = vld [vmem:[#allocation10 + $0x40] sm:$0xff]
    %v85 = vld [vmem:[#allocation10 + $0x48] sm:$0xff]
    %v86 = vld [vmem:[#allocation10 + $0x50] sm:$0xff]
    %v87 = vld [vmem:[#allocation10 + $0x58] sm:$0xff]
    %v88 = vld [vmem:[#allocation10 + $0x60] sm:$0xff]
    %v89 = vld [vmem:[#allocation10 + $0x68] sm:$0xff]
    %v90 = vld [vmem:[#allocation10 + $0x70] sm:$0xff]
    %v91 = vld [vmem:[#allocation10 + $0x78] sm:$0xff]
    %s92 = sld [smem:[#allocation8]]
    %v93 = vstv %s92
    %v94 = vmul.f32 %v76, %v93
    %v95 = vmul.f32 %v77, %v93
    %v96 = vmul.f32 %v78, %v93
    %v97 = vmul.f32 %v79, %v93
    %v98 = vmul.f32 %v80, %v93
    %v99 = vmul.f32 %v81, %v93
    %v100 = vmul.f32 %v82, %v93
    %v101 = vmul.f32 %v83, %v93
    %v102 = vmul.f32 %v84, %v93
    %v103 = vmul.f32 %v85, %v93
    %v104 = vmul.f32 %v86, %v93
    %v105 = vmul.f32 %v87, %v93
    %v106 = vmul.f32 %v88, %v93
    %v107 = vmul.f32 %v89, %v93
    %v108 = vmul.f32 %v90, %v93
    %v109 = vmul.f32 %v91, %v93
    %v110 = vround.ne.pseudo %v94
    %v111 = vround.ne.pseudo %v95
    %v112 = vround.ne.pseudo %v96
    %v113 = vround.ne.pseudo %v97
    %v114 = vround.ne.pseudo %v98
    %v115 = vround.ne.pseudo %v99
    %v116 = vround.ne.pseudo %v100
    %v117 = vround.ne.pseudo %v101
    %v118 = vround.ne.pseudo %v102
    %v119 = vround.ne.pseudo %v103
    %v120 = vround.ne.pseudo %v104
    %v121 = vround.ne.pseudo %v105
    %v122 = vround.ne.pseudo %v106
    %v123 = vround.ne.pseudo %v107
    %v124 = vround.ne.pseudo %v108
    %v125 = vround.ne.pseudo %v109
    %v126 = vmax.f32 %v110, -2.0
    %v127 = vmax.f32 %v111, -2.0
    %v128 = vmax.f32 %v112, -2.0
    %v129 = vmax.f32 %v113, -2.0
    %v130 = vmax.f32 %v114, -2.0
    %v131 = vmax.f32 %v115, -2.0
    %v132 = vmax.f32 %v116, -2.0
    %v133 = vmax.f32 %v117, -2.0
    %v134 = vmax.f32 %v118, -2.0
    %v135 = vmax.f32 %v119, -2.0
    %v136 = vmax.f32 %v120, -2.0
    %v137 = vmax.f32 %v121, -2.0
    %v138 = vmax.f32 %v122, -2.0
    %v139 = vmax.f32 %v123, -2.0
    %v140 = vmax.f32 %v124, -2.0
    %v141 = vmax.f32 %v125, -2.0
    %v142 = vmin.f32 %v126, 1.0
    %v143 = vmin.f32 %v127, 1.0
    %v144 = vmin.f32 %v128, 1.0
    %v145 = vmin.f32 %v129, 1.0
    %v146 = vmin.f32 %v130, 1.0
    %v147 = vmin.f32 %v131, 1.0
    %v148 = vmin.f32 %v132, 1.0
    %v149 = vmin.f32 %v133, 1.0
    %v150 = vmin.f32 %v134, 1.0
    %v151 = vmin.f32 %v135, 1.0
    %v152 = vmin.f32 %v136, 1.0
    %v153 = vmin.f32 %v137, 1.0
    %v154 = vmin.f32 %v138, 1.0
    %v155 = vmin.f32 %v139, 1.0
    %v156 = vmin.f32 %v140, 1.0
    %v157 = vmin.f32 %v141, 1.0
    %s158 = sld [smem:[#allocation3]]
    %v159 = vstv %s158
    %v160 = vmul.f32 %v142, %v159
    %v161 = vmul.f32 %v143, %v159
    %v162 = vmul.f32 %v144, %v159
    %v163 = vmul.f32 %v145, %v159
    %v164 = vmul.f32 %v146, %v159
    %v165 = vmul.f32 %v147, %v159
    %v166 = vmul.f32 %v148, %v159
    %v167 = vmul.f32 %v149, %v159
    %v168 = vmul.f32 %v150, %v159
    %v169 = vmul.f32 %v151, %v159
    %v170 = vmul.f32 %v152, %v159
    %v171 = vmul.f32 %v153, %v159
    %v172 = vmul.f32 %v154, %v159
    %v173 = vmul.f32 %v155, %v159
    %v174 = vmul.f32 %v156, %v159
    %v175 = vmul.f32 %v157, %v159
    %v176 = vadd.f32 %v160, 0.0
    %v177 = vadd.f32 %v161, 0.0
    %v178 = vadd.f32 %v162, 0.0
    %v179 = vadd.f32 %v163, 0.0
    %v180 = vadd.f32 %v164, 0.0
    %v181 = vadd.f32 %v165, 0.0
    %v182 = vadd.f32 %v166, 0.0
    %v183 = vadd.f32 %v167, 0.0
    %v184 = vadd.f32 %v168, 0.0
    %v185 = vadd.f32 %v169, 0.0
    %v186 = vadd.f32 %v170, 0.0
    %v187 = vadd.f32 %v171, 0.0
    %v188 = vadd.f32 %v172, 0.0
    %v189 = vadd.f32 %v173, 0.0
    %v190 = vadd.f32 %v174, 0.0
    %v191 = vadd.f32 %v175, 0.0
    %s192 = sld [smem:[#allocation8 + $0x1]]
    %v193 = vstv %s192
    %v194 = vmul.f32 %v76, %v193
    %v195 = vmul.f32 %v77, %v193
    %v196 = vmul.f32 %v78, %v193
    %v197 = vmul.f32 %v79, %v193
    %v198 = vmul.f32 %v80, %v193
    %v199 = vmul.f32 %v81, %v193
    %v200 = vmul.f32 %v82, %v193
    %v201 = vmul.f32 %v83, %v193
    %v202 = vmul.f32 %v84, %v193
    %v203 = vmul.f32 %v85, %v193
    %v204 = vmul.f32 %v86, %v193
    %v205 = vmul.f32 %v87, %v193
    %v206 = vmul.f32 %v88, %v193
    %v207 = vmul.f32 %v89, %v193
    %v208 = vmul.f32 %v90, %v193
    %v209 = vmul.f32 %v91, %v193
    %v210 = vround.ne.pseudo %v194
    %v211 = vround.ne.pseudo %v195
    %v212 = vround.ne.pseudo %v196
    %v213 = vround.ne.pseudo %v197
    %v214 = vround.ne.pseudo %v198
    %v215 = vround.ne.pseudo %v199
    %v216 = vround.ne.pseudo %v200
    %v217 = vround.ne.pseudo %v201
    %v218 = vround.ne.pseudo %v202
    %v219 = vround.ne.pseudo %v203
    %v220 = vround.ne.pseudo %v204
    %v221 = vround.ne.pseudo %v205
    %v222 = vround.ne.pseudo %v206
    %v223 = vround.ne.pseudo %v207
    %v224 = vround.ne.pseudo %v208
    %v225 = vround.ne.pseudo %v209
    %v226 = vmax.f32 %v210, -8.0
    %v227 = vmax.f32 %v211, -8.0
    %v228 = vmax.f32 %v212, -8.0
    %v229 = vmax.f32 %v213, -8.0
    %v230 = vmax.f32 %v214, -8.0
    %v231 = vmax.f32 %v215, -8.0
    %v232 = vmax.f32 %v216, -8.0
    %v233 = vmax.f32 %v217, -8.0
    %v234 = vmax.f32 %v218, -8.0
    %v235 = vmax.f32 %v219, -8.0
    %v236 = vmax.f32 %v220, -8.0
    %v237 = vmax.f32 %v221, -8.0
    %v238 = vmax.f32 %v222, -8.0
    %v239 = vmax.f32 %v223, -8.0
    %v240 = vmax.f32 %v224, -8.0
    %v241 = vmax.f32 %v225, -8.0
    %v242 = vmin.f32 %v226, 7.0
    %v243 = vmin.f32 %v227, 7.0
    %v244 = vmin.f32 %v228, 7.0
    %v245 = vmin.f32 %v229, 7.0
    %v246 = vmin.f32 %v230, 7.0
    %v247 = vmin.f32 %v231, 7.0
    %v248 = vmin.f32 %v232, 7.0
    %v249 = vmin.f32 %v233, 7.0
    %v250 = vmin.f32 %v234, 7.0
    %v251 = vmin.f32 %v235, 7.0
    %v252 = vmin.f32 %v236, 7.0
    %v253 = vmin.f32 %v237, 7.0
    %v254 = vmin.f32 %v238, 7.0
    %v255 = vmin.f32 %v239, 7.0
    %v256 = vmin.f32 %v240, 7.0
    %v257 = vmin.f32 %v241, 7.0
    %s258 = sld [smem:[#allocation3 + $0x1]]
    %v259 = vstv %s258
    %v260 = vmul.f32 %v242, %v259
    %v261 = vmul.f32 %v243, %v259
    %v262 = vmul.f32 %v244, %v259
    %v263 = vmul.f32 %v245, %v259
    %v264 = vmul.f32 %v246, %v259
    %v265 = vmul.f32 %v247, %v259
    %v266 = vmul.f32 %v248, %v259
    %v267 = vmul.f32 %v249, %v259
    %v268 = vmul.f32 %v250, %v259
    %v269 = vmul.f32 %v251, %v259
    %v270 = vmul.f32 %v252, %v259
    %v271 = vmul.f32 %v253, %v259
    %v272 = vmul.f32 %v254, %v259
    %v273 = vmul.f32 %v255, %v259
    %v274 = vmul.f32 %v256, %v259
    %v275 = vmul.f32 %v257, %v259
    %v276 = vadd.f32 %v176, %v260
    %v277 = vadd.f32 %v177, %v261
    %v278 = vadd.f32 %v178, %v262
    %v279 = vadd.f32 %v179, %v263
    %v280 = vadd.f32 %v180, %v264
    %v281 = vadd.f32 %v181, %v265
    %v282 = vadd.f32 %v182, %v266
    %v283 = vadd.f32 %v183, %v267
    %v284 = vadd.f32 %v184, %v268
    %v285 = vadd.f32 %v185, %v269
    %v286 = vadd.f32 %v186, %v270
    %v287 = vadd.f32 %v187, %v271
    %v288 = vadd.f32 %v188, %v272
    %v289 = vadd.f32 %v189, %v273
    %v290 = vadd.f32 %v190, %v274
    %v291 = vadd.f32 %v191, %v275
    %s292 = sld [smem:[#allocation8 + $0x2]]
    %v293 = vstv %s292
    %v294 = vmul.f32 %v76, %v293
    %v295 = vmul.f32 %v77, %v293
    %v296 = vmul.f32 %v78, %v293
    %v297 = vmul.f32 %v79, %v293
    %v298 = vmul.f32 %v80, %v293
    %v299 = vmul.f32 %v81, %v293
    %v300 = vmul.f32 %v82, %v293
    %v301 = vmul.f32 %v83, %v293
    %v302 = vmul.f32 %v84, %v293
    %v303 = vmul.f32 %v85, %v293
    %v304 = vmul.f32 %v86, %v293
    %v305 = vmul.f32 %v87, %v293
    %v306 = vmul.f32 %v88, %v293
    %v307 = vmul.f32 %v89, %v293
    %v308 = vmul.f32 %v90, %v293
    %v309 = vmul.f32 %v91, %v293
    %v310 = vround.ne.pseudo %v294
    %v311 = vround.ne.pseudo %v295
    %v312 = vround.ne.pseudo %v296
    %v313 = vround.ne.pseudo %v297
    %v314 = vround.ne.pseudo %v298
    %v315 = vround.ne.pseudo %v299
    %v316 = vround.ne.pseudo %v300
    %v317 = vround.ne.pseudo %v301
    %v318 = vround.ne.pseudo %v302
    %v319 = vround.ne.pseudo %v303
    %v320 = vround.ne.pseudo %v304
    %v321 = vround.ne.pseudo %v305
    %v322 = vround.ne.pseudo %v306
    %v323 = vround.ne.pseudo %v307
    %v324 = vround.ne.pseudo %v308
    %v325 = vround.ne.pseudo %v309
    %v326 = vmax.f32 %v310, -128.0
    %v327 = vmax.f32 %v311, -128.0
    %v328 = vmax.f32 %v312, -128.0
    %v329 = vmax.f32 %v313, -128.0
    %v330 = vmax.f32 %v314, -128.0
    %v331 = vmax.f32 %v315, -128.0
    %v332 = vmax.f32 %v316, -128.0
    %v333 = vmax.f32 %v317, -128.0
    %v334 = vmax.f32 %v318, -128.0
    %v335 = vmax.f32 %v319, -128.0
    %v336 = vmax.f32 %v320, -128.0
    %v337 = vmax.f32 %v321, -128.0
    %v338 = vmax.f32 %v322, -128.0
    %v339 = vmax.f32 %v323, -128.0
    %v340 = vmax.f32 %v324, -128.0
    %v341 = vmax.f32 %v325, -128.0
    %v342 = vmin.f32 %v326, 127.0
    %v343 = vmin.f32 %v327, 127.0
    %v344 = vmin.f32 %v328, 127.0
    %v345 = vmin.f32 %v329, 127.0
    %v346 = vmin.f32 %v330, 127.0
    %v347 = vmin.f32 %v331, 127.0
    %v348 = vmin.f32 %v332, 127.0
    %v349 = vmin.f32 %v333, 127.0
    %v350 = vmin.f32 %v334, 127.0
    %v351 = vmin.f32 %v335, 127.0
    %v352 = vmin.f32 %v336, 127.0
    %v353 = vmin.f32 %v337, 127.0
    %v354 = vmin.f32 %v338, 127.0
    %v355 = vmin.f32 %v339, 127.0
    %v356 = vmin.f32 %v340, 127.0
    %v357 = vmin.f32 %v341, 127.0
    %s358 = sld [smem:[#allocation3 + $0x2]]
    %v359 = vstv %s358
    %v360 = vmul.f32 %v342, %v359
    %v361 = vmul.f32 %v343, %v359
    %v362 = vmul.f32 %v344, %v359
    %v363 = vmul.f32 %v345, %v359
    %v364 = vmul.f32 %v346, %v359
    %v365 = vmul.f32 %v347, %v359
    %v366 = vmul.f32 %v348, %v359
    %v367 = vmul.f32 %v349, %v359
    %v368 = vmul.f32 %v350, %v359
    %v369 = vmul.f32 %v351, %v359
    %v370 = vmul.f32 %v352, %v359
    %v371 = vmul.f32 %v353, %v359
    %v372 = vmul.f32 %v354, %v359
    %v373 = vmul.f32 %v355, %v359
    %v374 = vmul.f32 %v356, %v359
    %v375 = vmul.f32 %v357, %v359
    %v376 = vadd.f32 %v276, %v360
    %v377 = vadd.f32 %v277, %v361
    %v378 = vadd.f32 %v278, %v362
    %v379 = vadd.f32 %v279, %v363
    %v380 = vadd.f32 %v280, %v364
    %v381 = vadd.f32 %v281, %v365
    %v382 = vadd.f32 %v282, %v366
    %v383 = vadd.f32 %v283, %v367
    %v384 = vadd.f32 %v284, %v368
    %v385 = vadd.f32 %v285, %v369
    %v386 = vadd.f32 %v286, %v370
    %v387 = vadd.f32 %v287, %v371
    %v388 = vadd.f32 %v288, %v372
    %v389 = vadd.f32 %v289, %v373
    %v390 = vadd.f32 %v290, %v374
    %v391 = vadd.f32 %v291, %v375
    %v392 = vld [vmem:[#allocation2] sm:$0xff]
    %v393 = vld [vmem:[#allocation9] sm:$0xff]
    %v394 = vpack.c.bf16 %v393, %v393
    %v395 = vpack.c.bf16 %v377, %v376
    %v396 = vpack.c.bf16 %v379, %v378
    %v397 = vpack.c.bf16 %v381, %v380
    %v398 = vpack.c.bf16 %v383, %v382
    %v399 = vpack.c.bf16 %v385, %v384
    %v400 = vpack.c.bf16 %v387, %v386
    %v401 = vpack.c.bf16 %v389, %v388
    %v402 = vpack.c.bf16 %v391, %v390
    %403 = vmatprep.subr.bf16.mxu0 0
    %404 = vmatpush1.bf16.msra.mxu0 %v395
    %405 = vmatprep.subr.bf16.mxu0 0
    %406 = vmatpush1.bf16.msra.mxu0 %v396
    %407 = vmatprep.subr.bf16.mxu0 0
    %408 = vmatpush1.bf16.msra.mxu0 %v397
    %409 = vmatprep.subr.bf16.mxu0 0
    %410 = vmatpush1.bf16.msra.mxu0 %v398
    %411 = vmatprep.subr.bf16.mxu0 0
    %412 = vmatpush1.bf16.msra.mxu0 %v399
    %413 = vmatprep.subr.bf16.mxu0 0
    %414 = vmatpush1.bf16.msra.mxu0 %v400
    %415 = vmatprep.subr.bf16.mxu0 0
    %416 = vmatpush1.bf16.msra.mxu0 %v401
    %417 = vmatprep.subr.bf16.mxu0 0
    %418 = vmatpush1.bf16.msra.mxu0 %v402
    %419 = vmatprep.subr.bf16.mxu0 0
    %420 = vmatpush1.bf16.msra.mxu0 0
    %421 = vmatprep.subr.bf16.mxu0 0
    %422 = vmatpush1.bf16.msra.mxu0 0
    %423 = vmatprep.subr.bf16.mxu0 0
    %424 = vmatpush1.bf16.msra.mxu0 0
    %425 = vmatprep.subr.bf16.mxu0 0
    %426 = vmatpush1.bf16.msra.mxu0 0
    %427 = vmatprep.subr.bf16.mxu0 0
    %428 = vmatpush1.bf16.msra.mxu0 0
    %429 = vmatprep.subr.bf16.mxu0 0
    %430 = vmatpush1.bf16.msra.mxu0 0
    %431 = vmatprep.subr.bf16.mxu0 0
    %432 = vmatpush1.bf16.msra.mxu0 0
    %433 = vmatprep.subr.bf16.mxu0 0
    %434 = vmatpush1.bf16.msra.mxu0 0
    %435 = vmatprep.mubr.bf16.mxu0 0
    %436 = vmatmul.mubr.bf16.gmra.mrb[0].mxu0 %v394
    %v437 = vpop.f32.mrb[0].mxu0
    %v438 = vadd.f32 0.0, %v437
    %v439 = vpop.f32.mrb[0].mxu0
    %v440 = vpop.f32.mrb[0].mxu0
    %v441 = vpop.f32.mrb[0].mxu0
    %442 = vdwg.mxu0
    %v443 = vadd.f32 %v392, %v438
    %444 = vst [vmem:[#allocation2] sm:$0xff] %v443
    // Predicated region
    $region42: #{tpu_custom_call.1} parent=1 // pred_check
      %p445 = pneg %p71
    $region43: #{tpu_custom_call.1} parent=1 // pred_check_branch
      %447 = sbr.rel (%p445) target = $region45
    $region44: #{tpu_custom_call.1} parent=1 // pred_region
      %v448 = vld [vmem:[#allocation2] sm:$0xff]
      %v449 = vld [vmem:[%s4] sm:$0x1]
      %v451 = vlaneseq
      %v452 = vshrl.u32 %v451, 7
      %v453 = vsub.s32 0, %v452
      %v454 = vrot.slane %v449, %v453
      %v456 = vadd.f32 %v448, %v454
      %457 = vst [vmem:[#allocation12] sm:$0xff] %v456
    $region45: #{tpu_custom_call.1} parent=1 // pred_fallthru
      _
    // Predicated region
    $region46: #{tpu_custom_call.1} parent=1 // pred_check
      _
    $region47: #{tpu_custom_call.1} parent=1 // pred_check_branch
      %459 = sbr.rel (0) target = $region49
    $region48: #{tpu_custom_call.1} parent=1 // pred_region
      %s461 = ssub.s32 128, 128
      %462 = vsyncadd [#allocation5], %s461
      %s464 = sshll.u32 [#allocation12], 4
      %s465 = int_to_ptr.vmem [resolvable:$true] %s464
      %467 = dma.vmem_to_hbm [thread:$0]  %s465, 128, %s5, [#allocation5]
    $region49: #{tpu_custom_call.1} parent=1 // pred_fallthru
      _
    // Predicated region
    $region50: #{tpu_custom_call.1} parent=1 // pred_check
      _
    $region51: #{tpu_custom_call.1} parent=1 // pred_check_branch
      %469 = sbr.rel (0) target = $region53
    $region52: #{tpu_custom_call.1} parent=1 // pred_region
      %470 = dma.done [#allocation5], 128
    $region53: #{tpu_custom_call.1} parent=1 // pred_fallthru
      _
    %471 = vsyncpa [#allocation4], 1
    %472 = vsyncpa [#allocation11], 1
    %473 = vsyncpa [#allocation5], 1
    %474 = vsyncpa [#allocation6], 1
    %475 = vsyncpa [#allocation7], 1

</llo_original>
